<compile_context>
chip_gen: v6e
topology: v6e:2x2x1
jax: 0.10.0
libtpu: 0.0.40
codegen_flags: <defaults>
</compile_context>

<pallas_src>
import jax
import jax.numpy as jnp
from jax.experimental import pallas as pl
from jax.experimental.pallas import tpu as pltpu


def rnn_kernel(x_ref, h0_ref, wih_ref, whh_ref, bias_ref, wfc_ref, bfc_ref,
               y_ref, hn_ref, work_ref):
    seq_batch, dim = work_ref.shape
    batch = h0_ref.shape[0]
    seq = seq_batch // batch

    # Hoisted input projection for all timesteps + combined bias:
    # one MXU matmul (seq*batch, 6) @ (6, dim), result parked in VMEM scratch.
    work_ref[...] = (
        jnp.dot(x_ref[...], wih_ref[...], preferred_element_type=jnp.float32)
        + bias_ref[...])

    whh = whh_ref[...]          # recurrent weights stay resident
    h = h0_ref[...]             # (batch, dim) f32

    # Fully-unrolled time recurrence (seq is static and small).  Each consumed
    # pre-activation row block is overwritten in place with the hidden state,
    # so a single scratch buffer serves both roles.
    # (For large seq, switch to lax.fori_loop(0, seq, ..., unroll=True).)
    for t in range(seq):
        rows = pl.ds(t * batch, batch)
        pre_t = work_ref[rows, :]                              # (batch, dim)
        h = jnp.tanh(
            jnp.dot(h, whh, preferred_element_type=jnp.float32) + pre_t)
        work_ref[rows, :] = h

    hn_ref[...] = h.astype(hn_ref.dtype)

    # Fused ReLU + (dropout = identity in eval) + Linear(dim, 1):
    # VPU multiply + lane-sum instead of a wasteful N=1 MXU matmul.
    out = jnp.maximum(work_ref[...], 0.0)                      # (seq*batch, dim)
    y = jnp.sum(out * wfc_ref[...], axis=-1, keepdims=True) + bfc_ref[...]
    y_ref[...] = y.astype(y_ref.dtype)


def rnn_forward(x, hidden, params):
    """x: (seq, batch, 6) f32, hidden: (1, batch, dim) f32."""
    seq, batch, in_dim = x.shape
    dim = hidden.shape[-1]

    # Wrapper-side layout plumbing / constant folding (all free in XLA).
    x2 = x.reshape(seq * batch, in_dim)                # (seq*batch, 6)
    h0 = hidden[0]                                     # (batch, dim)
    wih_t = params["w_ih"].T                           # (6, dim)
    whh_t = params["w_hh"].T                           # (dim, dim)
    bias = (params["b_ih"] + params["b_hh"]).reshape(1, dim)   # b_ih + b_hh
    wfc_row = params["w_fc"].reshape(1, dim)           # fc weight as a row
    bfc = params["b_fc"].reshape(1, 1)

    grid_spec = pltpu.PrefetchScalarGridSpec(
        num_scalar_prefetch=0,
        grid=(1,),                                     # single invocation
        in_specs=[
            pl.BlockSpec((seq * batch, in_dim), lambda i: (0, 0)),  # x (bulk)
            pl.BlockSpec((batch, dim), lambda i: (0, 0)),           # h0
            pl.BlockSpec((in_dim, dim), lambda i: (0, 0)),          # Wih^T
            pl.BlockSpec((dim, dim), lambda i: (0, 0)),             # Whh^T
            pl.BlockSpec((1, dim), lambda i: (0, 0)),               # b_ih+b_hh
            pl.BlockSpec((1, dim), lambda i: (0, 0)),               # Wfc row
            pl.BlockSpec((1, 1), lambda i: (0, 0)),                 # b_fc
        ],
        out_specs=[
            pl.BlockSpec((seq * batch, 1), lambda i: (0, 0)),       # y (flat)
            pl.BlockSpec((batch, dim), lambda i: (0, 0)),           # hidden_n
        ],
        scratch_shapes=[pltpu.VMEM((seq * batch, dim), jnp.float32)],
    )

    y_flat, hn = pl.pallas_call(
        rnn_kernel,
        out_shape=(
            jax.ShapeDtypeStruct((seq * batch, 1), x.dtype),
            jax.ShapeDtypeStruct((batch, dim), x.dtype),
        ),
        grid_spec=grid_spec,
        compiler_params=pltpu.CompilerParams(
            dimension_semantics=("arbitrary",)),
    )(x2, h0, wih_t, whh_t, bias, wfc_row, bfc)

    return y_flat.reshape(seq, batch, 1), hn.reshape(1, batch, dim)


def rnn_reference(x, hidden, params):
    """Pure-JAX reference matching PyTorch RNN forward (eval mode)."""
    def step(h, x_t):
        h_new = jnp.tanh(x_t @ params["w_ih"].T + params["b_ih"]
                         + h @ params["w_hh"].T + params["b_hh"])
        return h_new, h_new
    h_final, outs = jax.lax.scan(step, hidden[0], x)
    outs = jnp.maximum(outs, 0.0)
    y = outs @ params["w_fc"].T + params["b_fc"]
    return y, h_final[None]


def init_params(key, dim, in_dim=6):
    ks = jax.random.split(key, 6)
    bound = 1.0 / jnp.sqrt(dim)
    u = lambda k, shape: jax.random.uniform(k, shape, jnp.float32, -bound, bound)
    return {
        "w_ih": u(ks[0], (dim, in_dim)),
        "w_hh": u(ks[1], (dim, dim)),
        "b_ih": u(ks[2], (dim,)),
        "b_hh": u(ks[3], (dim,)),
        "w_fc": u(ks[4], (1, dim)),
        "b_fc": u(ks[5], (1,)),
    }


if __name__ == "__main__":
    seq, batch, in_dim, dim = 8, 2, 6, 32

    key = jax.random.PRNGKey(0)
    kx, kh, kp = jax.random.split(key, 3)
    x = jax.random.normal(kx, (seq, batch, in_dim), jnp.float32)
    hidden = jax.random.normal(kh, (1, batch, dim), jnp.float32)
    params = init_params(kp, dim, in_dim)

    y, hn = rnn_forward(x, hidden, params)
    y, hn = jax.block_until_ready((y, hn))

    y_ref, hn_ref = rnn_reference(x, hidden, params)
    assert y.shape == (seq, batch, 1) and hn.shape == (1, batch, dim)
    assert jnp.allclose(y, y_ref, atol=1e-5, rtol=1e-5)
    assert jnp.allclose(hn, hn_ref, atol=1e-5, rtol=1e-5)

    print("KERNEL_OK")
</pallas_src>

<mosaic_0001>
module attributes {stable_mosaic.version = 11 : i64} {
  func.func @rnn_kernel(%arg0: i32, %arg1: memref<16x6xf32, #tpu.memory_space<vmem>>, %arg2: memref<2x32xf32, #tpu.memory_space<vmem>>, %arg3: memref<6x32xf32, #tpu.memory_space<vmem>>, %arg4: memref<32x32xf32, #tpu.memory_space<vmem>>, %arg5: memref<1x32xf32, #tpu.memory_space<vmem>>, %arg6: memref<1x32xf32, #tpu.memory_space<vmem>>, %arg7: memref<1x1xf32, #tpu.memory_space<vmem>>, %arg8: memref<16x1xf32, #tpu.memory_space<vmem>>, %arg9: memref<2x32xf32, #tpu.memory_space<vmem>>, %arg10: memref<16x32xf32, #tpu.memory_space<vmem>>) attributes {dimension_semantics = [#tpu.dimension_semantics<arbitrary>], iteration_bounds = array<i64: 1>, scalar_prefetch = 0 : i64, scratch_operands = 1 : i64, tpu.core_type = #tpu.core_type<tc>, window_params = [{pipeline_mode = #tpu.pipeline_mode<synchronous>, transform_indices = @transform_0, window_bounds = array<i64: 16, 6>}, {pipeline_mode = #tpu.pipeline_mode<synchronous>, transform_indices = @transform_1, window_bounds = array<i64: 2, 32>}, {pipeline_mode = #tpu.pipeline_mode<synchronous>, transform_indices = @transform_2, window_bounds = array<i64: 6, 32>}, {pipeline_mode = #tpu.pipeline_mode<synchronous>, transform_indices = @transform_3, window_bounds = array<i64: 32, 32>}, {pipeline_mode = #tpu.pipeline_mode<synchronous>, transform_indices = @transform_4, window_bounds = array<i64: 1, 32>}, {pipeline_mode = #tpu.pipeline_mode<synchronous>, transform_indices = @transform_5, window_bounds = array<i64: 1, 32>}, {pipeline_mode = #tpu.pipeline_mode<synchronous>, transform_indices = @transform_6, window_bounds = array<i64: 1, 1>}, {pipeline_mode = #tpu.pipeline_mode<synchronous>, transform_indices = @transform_7, window_bounds = array<i64: 16, 1>}, {pipeline_mode = #tpu.pipeline_mode<synchronous>, transform_indices = @transform_8, window_bounds = array<i64: 2, 32>}]} {
    %c0 = arith.constant 0 : index
    %c0_0 = arith.constant 0 : index
    %0 = vector.load %arg1[%c0, %c0_0] : memref<16x6xf32, #tpu.memory_space<vmem>>, vector<16x6xf32>
    %c0_1 = arith.constant 0 : index
    %c0_2 = arith.constant 0 : index
    %1 = vector.load %arg3[%c0_1, %c0_2] : memref<6x32xf32, #tpu.memory_space<vmem>>, vector<6x32xf32>
    %cst = arith.constant dense<0.000000e+00> : vector<16x32xf32>
    %2 = tpu.matmul %0, %1, %cst {dimension_numbers = #tpu.dot_dimension_numbers<[1], [0], [0], [1], [0, 0, 1, 1], [], []>} : vector<16x6xf32>, vector<6x32xf32>, vector<16x32xf32> -> vector<16x32xf32>
    %c0_3 = arith.constant 0 : index
    %c0_4 = arith.constant 0 : index
    %3 = vector.load %arg5[%c0_3, %c0_4] : memref<1x32xf32, #tpu.memory_space<vmem>>, vector<1x32xf32>
    %4 = vector.broadcast %3 : vector<1x32xf32> to vector<16x32xf32>
    %5 = arith.addf %2, %4 : vector<16x32xf32>
    %c0_5 = arith.constant 0 : index
    %c0_6 = arith.constant 0 : index
    %6 = vector.load %arg10[%c0_5, %c0_6] : memref<16x32xf32, #tpu.memory_space<vmem>>, vector<16x32xf32>
    tpu.vector_store %arg10[%c0_5, %c0_6], %5 {strides = array<i32>} : memref<16x32xf32, #tpu.memory_space<vmem>>, vector<16x32xf32>,
    %c0_7 = arith.constant 0 : index
    %c0_8 = arith.constant 0 : index
    %7 = vector.load %arg4[%c0_7, %c0_8] : memref<32x32xf32, #tpu.memory_space<vmem>>, vector<32x32xf32>
    %c0_9 = arith.constant 0 : index
    %c0_10 = arith.constant 0 : index
    %8 = vector.load %arg2[%c0_9, %c0_10] : memref<2x32xf32, #tpu.memory_space<vmem>>, vector<2x32xf32>
    %c0_11 = arith.constant 0 : index
    %c0_12 = arith.constant 0 : index
    %9 = vector.load %arg10[%c0_11, %c0_12] : memref<16x32xf32, #tpu.memory_space<vmem>>, vector<2x32xf32>
    %cst_13 = arith.constant dense<0.000000e+00> : vector<2x32xf32>
    %10 = tpu.matmul %8, %7, %cst_13 {dimension_numbers = #tpu.dot_dimension_numbers<[1], [0], [0], [1], [0, 0, 1, 1], [], []>} : vector<2x32xf32>, vector<32x32xf32>, vector<2x32xf32> -> vector<2x32xf32>
    %11 = arith.addf %10, %9 : vector<2x32xf32>
    %12 = math.tanh %11 : vector<2x32xf32>
    %c0_14 = arith.constant 0 : index
    %c0_15 = arith.constant 0 : index
    %13 = vector.load %arg10[%c0_14, %c0_15] : memref<16x32xf32, #tpu.memory_space<vmem>>, vector<2x32xf32>
    tpu.vector_store %arg10[%c0_14, %c0_15], %12 {strides = array<i32>} : memref<16x32xf32, #tpu.memory_space<vmem>>, vector<2x32xf32>,
    %c2 = arith.constant 2 : index
    %c0_16 = arith.constant 0 : index
    %14 = vector.load %arg10[%c2, %c0_16] : memref<16x32xf32, #tpu.memory_space<vmem>>, vector<2x32xf32>
    %cst_17 = arith.constant dense<0.000000e+00> : vector<2x32xf32>
    %15 = tpu.matmul %12, %7, %cst_17 {dimension_numbers = #tpu.dot_dimension_numbers<[1], [0], [0], [1], [0, 0, 1, 1], [], []>} : vector<2x32xf32>, vector<32x32xf32>, vector<2x32xf32> -> vector<2x32xf32>
    %16 = arith.addf %15, %14 : vector<2x32xf32>
    %17 = math.tanh %16 : vector<2x32xf32>
    %c2_18 = arith.constant 2 : index
    %c0_19 = arith.constant 0 : index
    %18 = vector.load %arg10[%c2_18, %c0_19] : memref<16x32xf32, #tpu.memory_space<vmem>>, vector<2x32xf32>
    tpu.vector_store %arg10[%c2_18, %c0_19], %17 {strides = array<i32>} : memref<16x32xf32, #tpu.memory_space<vmem>>, vector<2x32xf32>,
    %c4 = arith.constant 4 : index
    %c0_20 = arith.constant 0 : index
    %19 = vector.load %arg10[%c4, %c0_20] : memref<16x32xf32, #tpu.memory_space<vmem>>, vector<2x32xf32>
    %cst_21 = arith.constant dense<0.000000e+00> : vector<2x32xf32>
    %20 = tpu.matmul %17, %7, %cst_21 {dimension_numbers = #tpu.dot_dimension_numbers<[1], [0], [0], [1], [0, 0, 1, 1], [], []>} : vector<2x32xf32>, vector<32x32xf32>, vector<2x32xf32> -> vector<2x32xf32>
    %21 = arith.addf %20, %19 : vector<2x32xf32>
    %22 = math.tanh %21 : vector<2x32xf32>
    %c4_22 = arith.constant 4 : index
    %c0_23 = arith.constant 0 : index
    %23 = vector.load %arg10[%c4_22, %c0_23] : memref<16x32xf32, #tpu.memory_space<vmem>>, vector<2x32xf32>
    tpu.vector_store %arg10[%c4_22, %c0_23], %22 {strides = array<i32>} : memref<16x32xf32, #tpu.memory_space<vmem>>, vector<2x32xf32>,
    %c6 = arith.constant 6 : index
    %c0_24 = arith.constant 0 : index
    %24 = vector.load %arg10[%c6, %c0_24] : memref<16x32xf32, #tpu.memory_space<vmem>>, vector<2x32xf32>
    %cst_25 = arith.constant dense<0.000000e+00> : vector<2x32xf32>
    %25 = tpu.matmul %22, %7, %cst_25 {dimension_numbers = #tpu.dot_dimension_numbers<[1], [0], [0], [1], [0, 0, 1, 1], [], []>} : vector<2x32xf32>, vector<32x32xf32>, vector<2x32xf32> -> vector<2x32xf32>
    %26 = arith.addf %25, %24 : vector<2x32xf32>
    %27 = math.tanh %26 : vector<2x32xf32>
    %c6_26 = arith.constant 6 : index
    %c0_27 = arith.constant 0 : index
    %28 = vector.load %arg10[%c6_26, %c0_27] : memref<16x32xf32, #tpu.memory_space<vmem>>, vector<2x32xf32>
    tpu.vector_store %arg10[%c6_26, %c0_27], %27 {strides = array<i32>} : memref<16x32xf32, #tpu.memory_space<vmem>>, vector<2x32xf32>,
    %c8 = arith.constant 8 : index
    %c0_28 = arith.constant 0 : index
    %29 = vector.load %arg10[%c8, %c0_28] : memref<16x32xf32, #tpu.memory_space<vmem>>, vector<2x32xf32>
    %cst_29 = arith.constant dense<0.000000e+00> : vector<2x32xf32>
    %30 = tpu.matmul %27, %7, %cst_29 {dimension_numbers = #tpu.dot_dimension_numbers<[1], [0], [0], [1], [0, 0, 1, 1], [], []>} : vector<2x32xf32>, vector<32x32xf32>, vector<2x32xf32> -> vector<2x32xf32>
    %31 = arith.addf %30, %29 : vector<2x32xf32>
    %32 = math.tanh %31 : vector<2x32xf32>
    %c8_30 = arith.constant 8 : index
    %c0_31 = arith.constant 0 : index
    %33 = vector.load %arg10[%c8_30, %c0_31] : memref<16x32xf32, #tpu.memory_space<vmem>>, vector<2x32xf32>
    tpu.vector_store %arg10[%c8_30, %c0_31], %32 {strides = array<i32>} : memref<16x32xf32, #tpu.memory_space<vmem>>, vector<2x32xf32>,
    %c10 = arith.constant 10 : index
    %c0_32 = arith.constant 0 : index
    %34 = vector.load %arg10[%c10, %c0_32] : memref<16x32xf32, #tpu.memory_space<vmem>>, vector<2x32xf32>
    %cst_33 = arith.constant dense<0.000000e+00> : vector<2x32xf32>
    %35 = tpu.matmul %32, %7, %cst_33 {dimension_numbers = #tpu.dot_dimension_numbers<[1], [0], [0], [1], [0, 0, 1, 1], [], []>} : vector<2x32xf32>, vector<32x32xf32>, vector<2x32xf32> -> vector<2x32xf32>
    %36 = arith.addf %35, %34 : vector<2x32xf32>
    %37 = math.tanh %36 : vector<2x32xf32>
    %c10_34 = arith.constant 10 : index
    %c0_35 = arith.constant 0 : index
    %38 = vector.load %arg10[%c10_34, %c0_35] : memref<16x32xf32, #tpu.memory_space<vmem>>, vector<2x32xf32>
    tpu.vector_store %arg10[%c10_34, %c0_35], %37 {strides = array<i32>} : memref<16x32xf32, #tpu.memory_space<vmem>>, vector<2x32xf32>,
    %c12 = arith.constant 12 : index
    %c0_36 = arith.constant 0 : index
    %39 = vector.load %arg10[%c12, %c0_36] : memref<16x32xf32, #tpu.memory_space<vmem>>, vector<2x32xf32>
    %cst_37 = arith.constant dense<0.000000e+00> : vector<2x32xf32>
    %40 = tpu.matmul %37, %7, %cst_37 {dimension_numbers = #tpu.dot_dimension_numbers<[1], [0], [0], [1], [0, 0, 1, 1], [], []>} : vector<2x32xf32>, vector<32x32xf32>, vector<2x32xf32> -> vector<2x32xf32>
    %41 = arith.addf %40, %39 : vector<2x32xf32>
    %42 = math.tanh %41 : vector<2x32xf32>
    %c12_38 = arith.constant 12 : index
    %c0_39 = arith.constant 0 : index
    %43 = vector.load %arg10[%c12_38, %c0_39] : memref<16x32xf32, #tpu.memory_space<vmem>>, vector<2x32xf32>
    tpu.vector_store %arg10[%c12_38, %c0_39], %42 {strides = array<i32>} : memref<16x32xf32, #tpu.memory_space<vmem>>, vector<2x32xf32>,
    %c14 = arith.constant 14 : index
    %c0_40 = arith.constant 0 : index
    %44 = vector.load %arg10[%c14, %c0_40] : memref<16x32xf32, #tpu.memory_space<vmem>>, vector<2x32xf32>
    %cst_41 = arith.constant dense<0.000000e+00> : vector<2x32xf32>
    %45 = tpu.matmul %42, %7, %cst_41 {dimension_numbers = #tpu.dot_dimension_numbers<[1], [0], [0], [1], [0, 0, 1, 1], [], []>} : vector<2x32xf32>, vector<32x32xf32>, vector<2x32xf32> -> vector<2x32xf32>
    %46 = arith.addf %45, %44 : vector<2x32xf32>
    %47 = math.tanh %46 : vector<2x32xf32>
    %c14_42 = arith.constant 14 : index
    %c0_43 = arith.constant 0 : index
    %48 = vector.load %arg10[%c14_42, %c0_43] : memref<16x32xf32, #tpu.memory_space<vmem>>, vector<2x32xf32>
    tpu.vector_store %arg10[%c14_42, %c0_43], %47 {strides = array<i32>} : memref<16x32xf32, #tpu.memory_space<vmem>>, vector<2x32xf32>,
    %c0_44 = arith.constant 0 : index
    %c0_45 = arith.constant 0 : index
    %49 = vector.load %arg9[%c0_44, %c0_45] : memref<2x32xf32, #tpu.memory_space<vmem>>, vector<2x32xf32>
    tpu.vector_store %arg9[%c0_44, %c0_45], %47 {strides = array<i32>} : memref<2x32xf32, #tpu.memory_space<vmem>>, vector<2x32xf32>,
    %c0_46 = arith.constant 0 : index
    %c0_47 = arith.constant 0 : index
    %50 = vector.load %arg10[%c0_46, %c0_47] : memref<16x32xf32, #tpu.memory_space<vmem>>, vector<16x32xf32>
    %cst_48 = arith.constant 0.000000e+00 : f32
    %51 = vector.broadcast %cst_48 : f32 to vector<16x32xf32>
    %52 = arith.maximumf %50, %51 : vector<16x32xf32>
    %c0_49 = arith.constant 0 : index
    %c0_50 = arith.constant 0 : index
    %53 = vector.load %arg6[%c0_49, %c0_50] : memref<1x32xf32, #tpu.memory_space<vmem>>, vector<1x32xf32>
    %54 = vector.broadcast %53 : vector<1x32xf32> to vector<16x32xf32>
    %55 = arith.mulf %52, %54 : vector<16x32xf32>
    %cst_51 = arith.constant dense<0.000000e+00> : vector<16xf32>
    %56 = vector.multi_reduction <add>, %55, %cst_51 [1] : vector<16x32xf32> to vector<16xf32>
    %57 = vector.shape_cast %56 : vector<16xf32> to vector<16x1xf32>
    %c0_52 = arith.constant 0 : index
    %c0_53 = arith.constant 0 : index
    %58 = vector.load %arg7[%c0_52, %c0_53] : memref<1x1xf32, #tpu.memory_space<vmem>>, vector<1x1xf32>
    %59 = vector.broadcast %58 : vector<1x1xf32> to vector<16x1xf32>
    %60 = arith.addf %57, %59 : vector<16x1xf32>
    %c0_54 = arith.constant 0 : index
    %c0_55 = arith.constant 0 : index
    %61 = vector.load %arg8[%c0_54, %c0_55] : memref<16x1xf32, #tpu.memory_space<vmem>>, vector<16x1xf32>
    tpu.vector_store %arg8[%c0_54, %c0_55], %60 {strides = array<i32>} : memref<16x1xf32, #tpu.memory_space<vmem>>, vector<16x1xf32>,
    return
  }
  func.func @transform_0(%arg0: i32) -> (i32, i32) {
    %c0_i32 = arith.constant 0 : i32
    %c0_i32_0 = arith.constant 0 : i32
    %c0_i32_1 = arith.constant 0 : i32
    return %c0_i32, %c0_i32_0 : i32, i32
  }
  func.func @transform_1(%arg0: i32) -> (i32, i32) {
    %c0_i32 = arith.constant 0 : i32
    %c0_i32_0 = arith.constant 0 : i32
    %c0_i32_1 = arith.constant 0 : i32
    return %c0_i32, %c0_i32_0 : i32, i32
  }
  func.func @transform_2(%arg0: i32) -> (i32, i32) {
    %c0_i32 = arith.constant 0 : i32
    %c0_i32_0 = arith.constant 0 : i32
    %c0_i32_1 = arith.constant 0 : i32
    return %c0_i32, %c0_i32_0 : i32, i32
  }
  func.func @transform_3(%arg0: i32) -> (i32, i32) {
    %c0_i32 = arith.constant 0 : i32
    %c0_i32_0 = arith.constant 0 : i32
    %c0_i32_1 = arith.constant 0 : i32
    return %c0_i32, %c0_i32_0 : i32, i32
  }
  func.func @transform_4(%arg0: i32) -> (i32, i32) {
    %c0_i32 = arith.constant 0 : i32
    %c0_i32_0 = arith.constant 0 : i32
    %c0_i32_1 = arith.constant 0 : i32
    return %c0_i32, %c0_i32_0 : i32, i32
  }
  func.func @transform_5(%arg0: i32) -> (i32, i32) {
    %c0_i32 = arith.constant 0 : i32
    %c0_i32_0 = arith.constant 0 : i32
    %c0_i32_1 = arith.constant 0 : i32
    return %c0_i32, %c0_i32_0 : i32, i32
  }
  func.func @transform_6(%arg0: i32) -> (i32, i32) {
    %c0_i32 = arith.constant 0 : i32
    %c0_i32_0 = arith.constant 0 : i32
    %c0_i32_1 = arith.constant 0 : i32
    return %c0_i32, %c0_i32_0 : i32, i32
  }
  func.func @transform_7(%arg0: i32) -> (i32, i32) {
    %c0_i32 = arith.constant 0 : i32
    %c0_i32_0 = arith.constant 0 : i32
    %c0_i32_1 = arith.constant 0 : i32
    return %c0_i32, %c0_i32_0 : i32, i32
  }
  func.func @transform_8(%arg0: i32) -> (i32, i32) {
    %c0_i32 = arith.constant 0 : i32
    %c0_i32_0 = arith.constant 0 : i32
    %c0_i32_1 = arith.constant 0 : i32
    return %c0_i32, %c0_i32_0 : i32, i32
  }
}

</mosaic_0001>

<llo_original>
// kernel: tpu_custom_call.1
$region0: #{tpu_custom_call.1}
  #allocation0 [shape = 'u32[]', space=smem, size = 0x4, offset = 0x4, fixed_abs, tag = 'smem constant byte address 0x4 - core index']
  #allocation1 [shape = 'u32[144,128]{1,0:T(1,128)}', space=vmem, size = 0x12000, scoped, tag = 'internal scratch']
  #allocation2 [shape = 'f32[16,32]{1,0:T(8,128)}', space=vmem, size = 0x2000, scoped, tag = 'scratch operand']
  #allocation3 [shape = 'f32[1,1]{1,0:T(1,128)S(1)}', space=vmem, size = 0x200, scoped, tag = 'scoped memory for tpu_custom_call.1']
  %s0 = inlined_call_operand.vmem [shape: f32[16,6], index: 0, kind: input, shape index: {}]
  %s1 = inlined_call_operand.vmem [shape: f32[2,32], index: 1, kind: input, shape index: {}]
  %s2 = inlined_call_operand.vmem [shape: f32[6,32], index: 2, kind: input, shape index: {}]
  %s3 = inlined_call_operand.hbm [shape: f32[32,32], index: 3, kind: input, shape index: {}]
  %s4 = inlined_call_operand.vmem [shape: f32[1,32], index: 4, kind: input, shape index: {}]
  %s5 = inlined_call_operand.vmem [shape: f32[1,32], index: 5, kind: input, shape index: {}]
  %s6 = inlined_call_operand.<no memory space> [shape: f32[1,1], index: 6, kind: input, shape index: {}]
  %s7 = inlined_call_operand.vmem [shape: f32[16,1], index: 7, kind: output, shape index: {0}]
  %s8 = inlined_call_operand.hbm [shape: f32[2,32], index: 8, kind: output, shape index: {1}]
  %9 = xla_tuple %s7, %s8
  %s10 = sld [smem:[#allocation0]]
  $region50: #{tpu_custom_call.1} parent=0
    _
  %s12 = ssub.s32 1, %s10
  %s13 = scalar_select 0, %s12, %s10
  %v14 = vstv %s6
  %15 = vst [vmem:[#allocation3] sm:$0x1] %v14
  $region1: #{tpu_custom_call.1} parent=0
    #allocation4 [shape = 'u8[16384]{0}', space=vmem, size = 0x4000, scoped, tag = 'input window, operand 3, single buffered']
    #allocation5 [shape = 's32[1]{0}', space=sflag, size = 0x4, scoped, tag = 'scoped memory for tpu_custom_call.1']
    #allocation6 [shape = 's32[1]{0}', space=sflag, size = 0x4, scoped, tag = 'scoped memory for tpu_custom_call.1']
    #allocation7 [shape = 'u8[1024]{0}', space=vmem, size = 0x400, scoped, tag = 'output window, operand 1, single buffered']
    %16 = vsyncpa [#allocation5], 0
    %17 = vsyncpa [#allocation6], 0
    // Predicated region
    $region2: #{tpu_custom_call.1} parent=1 // pred_check
      _
    $region3: #{tpu_custom_call.1} parent=1 // pred_check_branch
      %19 = sbr.rel (0) target = $region5
    $region4: #{tpu_custom_call.1} parent=1 // pred_region
      _
    $region5: #{tpu_custom_call.1} parent=1 // pred_fallthru
      _
    // Predicated region
    $region6: #{tpu_custom_call.1} parent=1 // pred_check
      _
    $region7: #{tpu_custom_call.1} parent=1 // pred_check_branch
      %21 = sbr.rel (0) target = $region9
    $region8: #{tpu_custom_call.1} parent=1 // pred_region
      _
    $region9: #{tpu_custom_call.1} parent=1 // pred_fallthru
      _
    // Predicated region
    $region10: #{tpu_custom_call.1} parent=1 // pred_check
      _
    $region11: #{tpu_custom_call.1} parent=1 // pred_check_branch
      %23 = sbr.rel (0) target = $region13
    $region12: #{tpu_custom_call.1} parent=1 // pred_region
      _
    $region13: #{tpu_custom_call.1} parent=1 // pred_fallthru
      _
    // Predicated region
    $region14: #{tpu_custom_call.1} parent=1 // pred_check
      _
    $region15: #{tpu_custom_call.1} parent=1 // pred_check_branch
      %25 = sbr.rel (0) target = $region17
    $region16: #{tpu_custom_call.1} parent=1 // pred_region
      %s27 = ssub.s32 512, 512
      %28 = vsyncadd [#allocation5], %s27
      %s29 = sshll.u32 [#allocation4], 4
      %s30 = int_to_ptr.vmem [resolvable:$true] %s29
      %35 = dma.hbm_to_vmem [thread:$0]  %s3, 512, %s30, [#allocation5], 128, 128, 8
    $region17: #{tpu_custom_call.1} parent=1 // pred_fallthru
      _
    // Predicated region
    $region18: #{tpu_custom_call.1} parent=1 // pred_check
      _
    $region19: #{tpu_custom_call.1} parent=1 // pred_check_branch
      %37 = sbr.rel (0) target = $region21
    $region20: #{tpu_custom_call.1} parent=1 // pred_region
      _
    $region21: #{tpu_custom_call.1} parent=1 // pred_fallthru
      _
    // Predicated region
    $region22: #{tpu_custom_call.1} parent=1 // pred_check
      _
    $region23: #{tpu_custom_call.1} parent=1 // pred_check_branch
      %39 = sbr.rel (0) target = $region25
    $region24: #{tpu_custom_call.1} parent=1 // pred_region
      _
    $region25: #{tpu_custom_call.1} parent=1 // pred_fallthru
      _
    // Predicated region
    $region26: #{tpu_custom_call.1} parent=1 // pred_check
      _
    $region27: #{tpu_custom_call.1} parent=1 // pred_check_branch
      %41 = sbr.rel (0) target = $region29
    $region28: #{tpu_custom_call.1} parent=1 // pred_region
      _
    $region29: #{tpu_custom_call.1} parent=1 // pred_fallthru
      _
    // Predicated region
    $region30: #{tpu_custom_call.1} parent=1 // pred_check
      _
    $region31: #{tpu_custom_call.1} parent=1 // pred_check_branch
      %43 = sbr.rel (0) target = $region33
    $region32: #{tpu_custom_call.1} parent=1 // pred_region
      %44 = dma.done [#allocation5], 512
    $region33: #{tpu_custom_call.1} parent=1 // pred_fallthru
      _
    %v45 = vld [vmem:[%s0] sm:$0xff]
    %v46 = vld [vmem:[%s0 + $0x8] sm:$0xff]
    %v47 = vld [vmem:[%s2] sm:$0x3f]
    %v48 = vld [vmem:[%s4] sm:$0x1]
    %v50 = vlaneseq
    %v51 = vshrl.u32 %v50, 7
    %v52 = vsub.s32 0, %v51
    %v53 = vrot.slane %v48, %v52
    %vm55 = vcmask 48128
    %v57 = vsel %vm55, %v45, 0
    %v60 = vsel %vm55, %v46, 0
    %vm62 = vcmask 1045504
    %v64 = vsel %vm62, %v47, 0
    %66 = vmatprep.subr.mxu0 0.0
    %67 = vmatpush1.msra.mxu0 0.0
    %68 = vmatprep.subr.mxu0 0.0
    %69 = vmatpush1.msra.mxu0 0.0
    %70 = vmatprep.subr.mxu0 0.0
    %71 = vmatpush1.msra.mxu0 0.0
    %72 = vmatprep.subr.mxu0 0.0
    %73 = vmatpush1.msra.mxu0 0.0
    %74 = vmatprep.subr.mxu0 0.0
    %75 = vmatpush1.msra.mxu0 0.0
    %76 = vmatprep.subr.mxu0 0.0
    %77 = vmatpush1.msra.mxu0 0.0
    %78 = vmatprep.subr.mxu0 0.0
    %79 = vmatpush1.msra.mxu0 0.0
    %80 = vmatprep.subr.mxu0 0.0
    %81 = vmatpush1.msra.mxu0 0.0
    %82 = vmatprep.subr.mxu0 0.0
    %83 = vmatpush1.msra.mxu0 0.0
    %84 = vmatprep.subr.mxu0 0.0
    %85 = vmatpush1.msra.mxu0 0.0
    %86 = vmatprep.subr.mxu0 0.0
    %87 = vmatpush1.msra.mxu0 0.0
    %88 = vmatprep.subr.mxu0 0.0
    %89 = vmatpush1.msra.mxu0 0.0
    %90 = vmatprep.subr.mxu0 0.0
    %91 = vmatpush1.msra.mxu0 0.0
    %92 = vmatprep.subr.mxu0 0.0
    %93 = vmatpush1.msra.mxu0 0.0
    %94 = vmatprep.subr.mxu0 0.0
    %95 = vmatpush1.msra.mxu0 0.0
    %96 = vmatprep.subr.mxu0 0.0
    %97 = vmatpush1.msra.mxu0 %v64
    %98 = vmatprep.subr.mxu0 0.0
    %99 = vmatpush2.msra.mxu0 0.0
    %100 = vmatprep.subr.mxu0 0.0
    %101 = vmatpush2.msra.mxu0 0.0
    %102 = vmatprep.subr.mxu0 0.0
    %103 = vmatpush2.msra.mxu0 0.0
    %104 = vmatprep.subr.mxu0 0.0
    %105 = vmatpush2.msra.mxu0 0.0
    %106 = vmatprep.subr.mxu0 0.0
    %107 = vmatpush2.msra.mxu0 0.0
    %108 = vmatprep.subr.mxu0 0.0
    %109 = vmatpush2.msra.mxu0 0.0
    %110 = vmatprep.subr.mxu0 0.0
    %111 = vmatpush2.msra.mxu0 0.0
    %112 = vmatprep.subr.mxu0 0.0
    %113 = vmatpush2.msra.mxu0 0.0
    %114 = vmatprep.subr.mxu0 0.0
    %115 = vmatpush2.msra.mxu0 0.0
    %116 = vmatprep.subr.mxu0 0.0
    %117 = vmatpush2.msra.mxu0 0.0
    %118 = vmatprep.subr.mxu0 0.0
    %119 = vmatpush2.msra.mxu0 0.0
    %120 = vmatprep.subr.mxu0 0.0
    %121 = vmatpush2.msra.mxu0 0.0
    %122 = vmatprep.subr.mxu0 0.0
    %123 = vmatpush2.msra.mxu0 0.0
    %124 = vmatprep.subr.mxu0 0.0
    %125 = vmatpush2.msra.mxu0 0.0
    %126 = vmatprep.subr.mxu0 0.0
    %127 = vmatpush2.msra.mxu0 0.0
    %128 = vmatprep.subr.mxu0 0.0
    %129 = vmatpush2.msra.mxu0 0.0
    %130 = vmatprep.mubr.f32.mxu0 0.0
    %131 = vmatmul.mubr.f32.gmra.mxu0 %v57
    %v132 = vpop.f32.mrf.mxu0
    %v133 = vadd.f32 %v53, %v132
    %v134 = vpop.f32.mrf.mxu0
    %135 = vmatprep.mubr.f32.mxu0 0.0
    %136 = vmatmul.mubr.f32.gmra.mxu0 %v60
    %v137 = vpop.f32.mrf.mxu0
    %v138 = vadd.f32 %v53, %v137
    %v139 = vpop.f32.mrf.mxu0
    %140 = vdwg.mxu0
    %vm141 = vcmask 261120
    %142 = vst.msk [vmem:[#allocation2] sm:$0xff] %vm141, %v133
    %143 = vst.msk [vmem:[#allocation2 + $0x8] sm:$0xff] %vm141, %v138
    %v144 = vld [vmem:[#allocation4] sm:$0xff]
    %v145 = vld [vmem:[#allocation4 + $0x8] sm:$0xff]
    %v146 = vld [vmem:[#allocation4 + $0x10] sm:$0xff]
    %v147 = vld [vmem:[#allocation4 + $0x18] sm:$0xff]
    %v148 = vld [vmem:[%s1] sm:$0x3]
    %v149 = vld [vmem:[#allocation2] sm:$0x3]
    %v151 = vsel %vm141, %v148, 0
    %153 = vmatprep.subr.mxu0 0.0
    %154 = vmatpush1.msra.mxu0 0.0
    %155 = vmatprep.subr.mxu0 0.0
    %156 = vmatpush1.msra.mxu0 0.0
    %157 = vmatprep.subr.mxu0 0.0
    %158 = vmatpush1.msra.mxu0 0.0
    %159 = vmatprep.subr.mxu0 0.0
    %160 = vmatpush1.msra.mxu0 0.0
    %161 = vmatprep.subr.mxu0 0.0
    %162 = vmatpush1.msra.mxu0 0.0
    %163 = vmatprep.subr.mxu0 0.0
    %164 = vmatpush1.msra.mxu0 0.0
    %165 = vmatprep.subr.mxu0 0.0
    %166 = vmatpush1.msra.mxu0 0.0
    %167 = vmatprep.subr.mxu0 0.0
    %168 = vmatpush1.msra.mxu0 0.0
    %169 = vmatprep.subr.mxu0 0.0
    %170 = vmatpush1.msra.mxu0 0.0
    %171 = vmatprep.subr.mxu0 0.0
    %172 = vmatpush1.msra.mxu0 0.0
    %173 = vmatprep.subr.mxu0 0.0
    %174 = vmatpush1.msra.mxu0 0.0
    %175 = vmatprep.subr.mxu0 0.0
    %176 = vmatpush1.msra.mxu0 0.0
    %177 = vmatprep.subr.mxu0 0.0
    %178 = vmatpush1.msra.mxu0 %v147
    %179 = vmatprep.subr.mxu0 0.0
    %180 = vmatpush1.msra.mxu0 %v146
    %181 = vmatprep.subr.mxu0 0.0
    %182 = vmatpush1.msra.mxu0 %v145
    %183 = vmatprep.subr.mxu0 0.0
    %184 = vmatpush1.msra.mxu0 %v144
    %185 = vmatprep.subr.mxu0 0.0
    %186 = vmatpush2.msra.mxu0 0.0
    %187 = vmatprep.subr.mxu0 0.0
    %188 = vmatpush2.msra.mxu0 0.0
    %189 = vmatprep.subr.mxu0 0.0
    %190 = vmatpush2.msra.mxu0 0.0
    %191 = vmatprep.subr.mxu0 0.0
    %192 = vmatpush2.msra.mxu0 0.0
    %193 = vmatprep.subr.mxu0 0.0
    %194 = vmatpush2.msra.mxu0 0.0
    %195 = vmatprep.subr.mxu0 0.0
    %196 = vmatpush2.msra.mxu0 0.0
    %197 = vmatprep.subr.mxu0 0.0
    %198 = vmatpush2.msra.mxu0 0.0
    %199 = vmatprep.subr.mxu0 0.0
    %200 = vmatpush2.msra.mxu0 0.0
    %201 = vmatprep.subr.mxu0 0.0
    %202 = vmatpush2.msra.mxu0 0.0
    %203 = vmatprep.subr.mxu0 0.0
    %204 = vmatpush2.msra.mxu0 0.0
    %205 = vmatprep.subr.mxu0 0.0
    %206 = vmatpush2.msra.mxu0 0.0
    %207 = vmatprep.subr.mxu0 0.0
    %208 = vmatpush2.msra.mxu0 0.0
    %209 = vmatprep.subr.mxu0 0.0
    %210 = vmatpush2.msra.mxu0 0.0
    %211 = vmatprep.subr.mxu0 0.0
    %212 = vmatpush2.msra.mxu0 0.0
    %213 = vmatprep.subr.mxu0 0.0
    %214 = vmatpush2.msra.mxu0 0.0
    %215 = vmatprep.subr.mxu0 0.0
    %216 = vmatpush2.msra.mxu0 0.0
    %217 = vmatprep.mubr.f32.mxu0 0.0
    %218 = vmatmul.mubr.f32.gmra.mxu0 %v151
    %v219 = vpop.f32.mrf.mxu0
    %v220 = vadd.f32 %v149, %v219
    %v221 = vpop.f32.mrf.mxu0
    %222 = vdwg.mxu0
    %v223 = vtanh.pop %v220
    %vm224 = vcmask 254976
    %225 = vst.msk [vmem:[#allocation2] sm:$0x3] %vm224, %v223
    %v226 = vld [vmem:[#allocation2 + $0x2] sm:$0x3]
    %v228 = vsel %vm141, %v223, 0
    %230 = vmatprep.subr.mxu0 0.0
    %231 = vmatpush1.msra.mxu0 0.0
    %232 = vmatprep.subr.mxu0 0.0
    %233 = vmatpush1.msra.mxu0 0.0
    %234 = vmatprep.subr.mxu0 0.0
    %235 = vmatpush1.msra.mxu0 0.0
    %236 = vmatprep.subr.mxu0 0.0
    %237 = vmatpush1.msra.mxu0 0.0
    %238 = vmatprep.subr.mxu0 0.0
    %239 = vmatpush1.msra.mxu0 0.0
    %240 = vmatprep.subr.mxu0 0.0
    %241 = vmatpush1.msra.mxu0 0.0
    %242 = vmatprep.subr.mxu0 0.0
    %243 = vmatpush1.msra.mxu0 0.0
    %244 = vmatprep.subr.mxu0 0.0
    %245 = vmatpush1.msra.mxu0 0.0
    %246 = vmatprep.subr.mxu0 0.0
    %247 = vmatpush1.msra.mxu0 0.0
    %248 = vmatprep.subr.mxu0 0.0
    %249 = vmatpush1.msra.mxu0 0.0
    %250 = vmatprep.subr.mxu0 0.0
    %251 = vmatpush1.msra.mxu0 0.0
    %252 = vmatprep.subr.mxu0 0.0
    %253 = vmatpush1.msra.mxu0 0.0
    %254 = vmatprep.subr.mxu0 0.0
    %255 = vmatpush1.msra.mxu0 %v147
    %256 = vmatprep.subr.mxu0 0.0
    %257 = vmatpush1.msra.mxu0 %v146
    %258 = vmatprep.subr.mxu0 0.0
    %259 = vmatpush1.msra.mxu0 %v145
    %260 = vmatprep.subr.mxu0 0.0
    %261 = vmatpush1.msra.mxu0 %v144
    %262 = vmatprep.subr.mxu0 0.0
    %263 = vmatpush2.msra.mxu0 0.0
    %264 = vmatprep.subr.mxu0 0.0
    %265 = vmatpush2.msra.mxu0 0.0
    %266 = vmatprep.subr.mxu0 0.0
    %267 = vmatpush2.msra.mxu0 0.0
    %268 = vmatprep.subr.mxu0 0.0
    %269 = vmatpush2.msra.mxu0 0.0
    %270 = vmatprep.subr.mxu0 0.0
    %271 = vmatpush2.msra.mxu0 0.0
    %272 = vmatprep.subr.mxu0 0.0
    %273 = vmatpush2.msra.mxu0 0.0
    %274 = vmatprep.subr.mxu0 0.0
    %275 = vmatpush2.msra.mxu0 0.0
    %276 = vmatprep.subr.mxu0 0.0
    %277 = vmatpush2.msra.mxu0 0.0
    %278 = vmatprep.subr.mxu0 0.0
    %279 = vmatpush2.msra.mxu0 0.0
    %280 = vmatprep.subr.mxu0 0.0
    %281 = vmatpush2.msra.mxu0 0.0
    %282 = vmatprep.subr.mxu0 0.0
    %283 = vmatpush2.msra.mxu0 0.0
    %284 = vmatprep.subr.mxu0 0.0
    %285 = vmatpush2.msra.mxu0 0.0
    %286 = vmatprep.subr.mxu0 0.0
    %287 = vmatpush2.msra.mxu0 0.0
    %288 = vmatprep.subr.mxu0 0.0
    %289 = vmatpush2.msra.mxu0 0.0
    %290 = vmatprep.subr.mxu0 0.0
    %291 = vmatpush2.msra.mxu0 0.0
    %292 = vmatprep.subr.mxu0 0.0
    %293 = vmatpush2.msra.mxu0 0.0
    %294 = vmatprep.mubr.f32.mxu0 0.0
    %295 = vmatmul.mubr.f32.gmra.mxu0 %v228
    %v296 = vpop.f32.mrf.mxu0
    %v297 = vadd.f32 %v226, %v296
    %v298 = vpop.f32.mrf.mxu0
    %299 = vdwg.mxu0
    %v300 = vtanh.pop %v297
    %301 = vst.msk [vmem:[#allocation2 + $0x2] sm:$0x3] %vm224, %v300
    %v302 = vld [vmem:[#allocation2 + $0x4] sm:$0x3]
    %v304 = vsel %vm141, %v300, 0
    %306 = vmatprep.subr.mxu0 0.0
    %307 = vmatpush1.msra.mxu0 0.0
    %308 = vmatprep.subr.mxu0 0.0
    %309 = vmatpush1.msra.mxu0 0.0
    %310 = vmatprep.subr.mxu0 0.0
    %311 = vmatpush1.msra.mxu0 0.0
    %312 = vmatprep.subr.mxu0 0.0
    %313 = vmatpush1.msra.mxu0 0.0
    %314 = vmatprep.subr.mxu0 0.0
    %315 = vmatpush1.msra.mxu0 0.0
    %316 = vmatprep.subr.mxu0 0.0
    %317 = vmatpush1.msra.mxu0 0.0
    %318 = vmatprep.subr.mxu0 0.0
    %319 = vmatpush1.msra.mxu0 0.0
    %320 = vmatprep.subr.mxu0 0.0
    %321 = vmatpush1.msra.mxu0 0.0
    %322 = vmatprep.subr.mxu0 0.0
    %323 = vmatpush1.msra.mxu0 0.0
    %324 = vmatprep.subr.mxu0 0.0
    %325 = vmatpush1.msra.mxu0 0.0
    %326 = vmatprep.subr.mxu0 0.0
    %327 = vmatpush1.msra.mxu0 0.0
    %328 = vmatprep.subr.mxu0 0.0
    %329 = vmatpush1.msra.mxu0 0.0
    %330 = vmatprep.subr.mxu0 0.0
    %331 = vmatpush1.msra.mxu0 %v147
    %332 = vmatprep.subr.mxu0 0.0
    %333 = vmatpush1.msra.mxu0 %v146
    %334 = vmatprep.subr.mxu0 0.0
    %335 = vmatpush1.msra.mxu0 %v145
    %336 = vmatprep.subr.mxu0 0.0
    %337 = vmatpush1.msra.mxu0 %v144
    %338 = vmatprep.subr.mxu0 0.0
    %339 = vmatpush2.msra.mxu0 0.0
    %340 = vmatprep.subr.mxu0 0.0
    %341 = vmatpush2.msra.mxu0 0.0
    %342 = vmatprep.subr.mxu0 0.0
    %343 = vmatpush2.msra.mxu0 0.0
    %344 = vmatprep.subr.mxu0 0.0
    %345 = vmatpush2.msra.mxu0 0.0
    %346 = vmatprep.subr.mxu0 0.0
    %347 = vmatpush2.msra.mxu0 0.0
    %348 = vmatprep.subr.mxu0 0.0
    %349 = vmatpush2.msra.mxu0 0.0
    %350 = vmatprep.subr.mxu0 0.0
    %351 = vmatpush2.msra.mxu0 0.0
    %352 = vmatprep.subr.mxu0 0.0
    %353 = vmatpush2.msra.mxu0 0.0
    %354 = vmatprep.subr.mxu0 0.0
    %355 = vmatpush2.msra.mxu0 0.0
    %356 = vmatprep.subr.mxu0 0.0
    %357 = vmatpush2.msra.mxu0 0.0
    %358 = vmatprep.subr.mxu0 0.0
    %359 = vmatpush2.msra.mxu0 0.0
    %360 = vmatprep.subr.mxu0 0.0
    %361 = vmatpush2.msra.mxu0 0.0
    %362 = vmatprep.subr.mxu0 0.0
    %363 = vmatpush2.msra.mxu0 0.0
    %364 = vmatprep.subr.mxu0 0.0
    %365 = vmatpush2.msra.mxu0 0.0
    %366 = vmatprep.subr.mxu0 0.0
    %367 = vmatpush2.msra.mxu0 0.0
    %368 = vmatprep.subr.mxu0 0.0
    %369 = vmatpush2.msra.mxu0 0.0
    %370 = vmatprep.mubr.f32.mxu0 0.0
    %371 = vmatmul.mubr.f32.gmra.mxu0 %v304
    %v372 = vpop.f32.mrf.mxu0
    %v373 = vadd.f32 %v302, %v372
    %v374 = vpop.f32.mrf.mxu0
    %375 = vdwg.mxu0
    %v376 = vtanh.pop %v373
    %377 = vst.msk [vmem:[#allocation2 + $0x4] sm:$0x3] %vm224, %v376
    %v378 = vld [vmem:[#allocation2 + $0x6] sm:$0x3]
    %v380 = vsel %vm141, %v376, 0
    %382 = vmatprep.subr.mxu0 0.0
    %383 = vmatpush1.msra.mxu0 0.0
    %384 = vmatprep.subr.mxu0 0.0
    %385 = vmatpush1.msra.mxu0 0.0
    %386 = vmatprep.subr.mxu0 0.0
    %387 = vmatpush1.msra.mxu0 0.0
    %388 = vmatprep.subr.mxu0 0.0
    %389 = vmatpush1.msra.mxu0 0.0
    %390 = vmatprep.subr.mxu0 0.0
    %391 = vmatpush1.msra.mxu0 0.0
    %392 = vmatprep.subr.mxu0 0.0
    %393 = vmatpush1.msra.mxu0 0.0
    %394 = vmatprep.subr.mxu0 0.0
    %395 = vmatpush1.msra.mxu0 0.0
    %396 = vmatprep.subr.mxu0 0.0
    %397 = vmatpush1.msra.mxu0 0.0
    %398 = vmatprep.subr.mxu0 0.0
    %399 = vmatpush1.msra.mxu0 0.0
    %400 = vmatprep.subr.mxu0 0.0
    %401 = vmatpush1.msra.mxu0 0.0
    %402 = vmatprep.subr.mxu0 0.0
    %403 = vmatpush1.msra.mxu0 0.0
    %404 = vmatprep.subr.mxu0 0.0
    %405 = vmatpush1.msra.mxu0 0.0
    %406 = vmatprep.subr.mxu0 0.0
    %407 = vmatpush1.msra.mxu0 %v147
    %408 = vmatprep.subr.mxu0 0.0
    %409 = vmatpush1.msra.mxu0 %v146
    %410 = vmatprep.subr.mxu0 0.0
    %411 = vmatpush1.msra.mxu0 %v145
    %412 = vmatprep.subr.mxu0 0.0
    %413 = vmatpush1.msra.mxu0 %v144
    %414 = vmatprep.subr.mxu0 0.0
    %415 = vmatpush2.msra.mxu0 0.0
    %416 = vmatprep.subr.mxu0 0.0
    %417 = vmatpush2.msra.mxu0 0.0
    %418 = vmatprep.subr.mxu0 0.0
    %419 = vmatpush2.msra.mxu0 0.0
    %420 = vmatprep.subr.mxu0 0.0
    %421 = vmatpush2.msra.mxu0 0.0
    %422 = vmatprep.subr.mxu0 0.0
    %423 = vmatpush2.msra.mxu0 0.0
    %424 = vmatprep.subr.mxu0 0.0
    %425 = vmatpush2.msra.mxu0 0.0
    %426 = vmatprep.subr.mxu0 0.0
    %427 = vmatpush2.msra.mxu0 0.0
    %428 = vmatprep.subr.mxu0 0.0
    %429 = vmatpush2.msra.mxu0 0.0
    %430 = vmatprep.subr.mxu0 0.0
    %431 = vmatpush2.msra.mxu0 0.0
    %432 = vmatprep.subr.mxu0 0.0
    %433 = vmatpush2.msra.mxu0 0.0
    %434 = vmatprep.subr.mxu0 0.0
    %435 = vmatpush2.msra.mxu0 0.0
    %436 = vmatprep.subr.mxu0 0.0
    %437 = vmatpush2.msra.mxu0 0.0
    %438 = vmatprep.subr.mxu0 0.0
    %439 = vmatpush2.msra.mxu0 0.0
    %440 = vmatprep.subr.mxu0 0.0
    %441 = vmatpush2.msra.mxu0 0.0
    %442 = vmatprep.subr.mxu0 0.0
    %443 = vmatpush2.msra.mxu0 0.0
    %444 = vmatprep.subr.mxu0 0.0
    %445 = vmatpush2.msra.mxu0 0.0
    %446 = vmatprep.mubr.f32.mxu0 0.0
    %447 = vmatmul.mubr.f32.gmra.mxu0 %v380
    %v448 = vpop.f32.mrf.mxu0
    %v449 = vadd.f32 %v378, %v448
    %v450 = vpop.f32.mrf.mxu0
    %451 = vdwg.mxu0
    %v452 = vtanh.pop %v449
    %453 = vst.msk [vmem:[#allocation2 + $0x6] sm:$0x3] %vm224, %v452
    %v454 = vld [vmem:[#allocation2 + $0x8] sm:$0x3]
    %v456 = vsel %vm141, %v452, 0
    %458 = vmatprep.subr.mxu0 0.0
    %459 = vmatpush1.msra.mxu0 0.0
    %460 = vmatprep.subr.mxu0 0.0
    %461 = vmatpush1.msra.mxu0 0.0
    %462 = vmatprep.subr.mxu0 0.0
    %463 = vmatpush1.msra.mxu0 0.0
    %464 = vmatprep.subr.mxu0 0.0
    %465 = vmatpush1.msra.mxu0 0.0
    %466 = vmatprep.subr.mxu0 0.0
    %467 = vmatpush1.msra.mxu0 0.0
    %468 = vmatprep.subr.mxu0 0.0
    %469 = vmatpush1.msra.mxu0 0.0
    %470 = vmatprep.subr.mxu0 0.0
    %471 = vmatpush1.msra.mxu0 0.0
    %472 = vmatprep.subr.mxu0 0.0
    %473 = vmatpush1.msra.mxu0 0.0
    %474 = vmatprep.subr.mxu0 0.0
    %475 = vmatpush1.msra.mxu0 0.0
    %476 = vmatprep.subr.mxu0 0.0
    %477 = vmatpush1.msra.mxu0 0.0
    %478 = vmatprep.subr.mxu0 0.0
    %479 = vmatpush1.msra.mxu0 0.0
    %480 = vmatprep.subr.mxu0 0.0
    %481 = vmatpush1.msra.mxu0 0.0
    %482 = vmatprep.subr.mxu0 0.0
    %483 = vmatpush1.msra.mxu0 %v147
    %484 = vmatprep.subr.mxu0 0.0
    %485 = vmatpush1.msra.mxu0 %v146
    %486 = vmatprep.subr.mxu0 0.0
    %487 = vmatpush1.msra.mxu0 %v145
    %488 = vmatprep.subr.mxu0 0.0
    %489 = vmatpush1.msra.mxu0 %v144
    %490 = vmatprep.subr.mxu0 0.0
    %491 = vmatpush2.msra.mxu0 0.0
    %492 = vmatprep.subr.mxu0 0.0
    %493 = vmatpush2.msra.mxu0 0.0
    %494 = vmatprep.subr.mxu0 0.0
    %495 = vmatpush2.msra.mxu0 0.0
    %496 = vmatprep.subr.mxu0 0.0
    %497 = vmatpush2.msra.mxu0 0.0
    %498 = vmatprep.subr.mxu0 0.0
    %499 = vmatpush2.msra.mxu0 0.0
    %500 = vmatprep.subr.mxu0 0.0
    %501 = vmatpush2.msra.mxu0 0.0
    %502 = vmatprep.subr.mxu0 0.0
    %503 = vmatpush2.msra.mxu0 0.0
    %504 = vmatprep.subr.mxu0 0.0
    %505 = vmatpush2.msra.mxu0 0.0
    %506 = vmatprep.subr.mxu0 0.0
    %507 = vmatpush2.msra.mxu0 0.0
    %508 = vmatprep.subr.mxu0 0.0
    %509 = vmatpush2.msra.mxu0 0.0
    %510 = vmatprep.subr.mxu0 0.0
    %511 = vmatpush2.msra.mxu0 0.0
    %512 = vmatprep.subr.mxu0 0.0
    %513 = vmatpush2.msra.mxu0 0.0
    %514 = vmatprep.subr.mxu0 0.0
    %515 = vmatpush2.msra.mxu0 0.0
    %516 = vmatprep.subr.mxu0 0.0
    %517 = vmatpush2.msra.mxu0 0.0
    %518 = vmatprep.subr.mxu0 0.0
    %519 = vmatpush2.msra.mxu0 0.0
    %520 = vmatprep.subr.mxu0 0.0
    %521 = vmatpush2.msra.mxu0 0.0
    %522 = vmatprep.mubr.f32.mxu0 0.0
    %523 = vmatmul.mubr.f32.gmra.mxu0 %v456
    %v524 = vpop.f32.mrf.mxu0
    %v525 = vadd.f32 %v454, %v524
    %v526 = vpop.f32.mrf.mxu0
    %527 = vdwg.mxu0
    %v528 = vtanh.pop %v525
    %529 = vst.msk [vmem:[#allocation2 + $0x8] sm:$0x3] %vm224, %v528
    %v530 = vld [vmem:[#allocation2 + $0xa] sm:$0x3]
    %v532 = vsel %vm141, %v528, 0
    %534 = vmatprep.subr.mxu0 0.0
    %535 = vmatpush1.msra.mxu0 0.0
    %536 = vmatprep.subr.mxu0 0.0
    %537 = vmatpush1.msra.mxu0 0.0
    %538 = vmatprep.subr.mxu0 0.0
    %539 = vmatpush1.msra.mxu0 0.0
    %540 = vmatprep.subr.mxu0 0.0
    %541 = vmatpush1.msra.mxu0 0.0
    %542 = vmatprep.subr.mxu0 0.0
    %543 = vmatpush1.msra.mxu0 0.0
    %544 = vmatprep.subr.mxu0 0.0
    %545 = vmatpush1.msra.mxu0 0.0
    %546 = vmatprep.subr.mxu0 0.0
    %547 = vmatpush1.msra.mxu0 0.0
    %548 = vmatprep.subr.mxu0 0.0
    %549 = vmatpush1.msra.mxu0 0.0
    %550 = vmatprep.subr.mxu0 0.0
    %551 = vmatpush1.msra.mxu0 0.0
    %552 = vmatprep.subr.mxu0 0.0
    %553 = vmatpush1.msra.mxu0 0.0
    %554 = vmatprep.subr.mxu0 0.0
    %555 = vmatpush1.msra.mxu0 0.0
    %556 = vmatprep.subr.mxu0 0.0
    %557 = vmatpush1.msra.mxu0 0.0
    %558 = vmatprep.subr.mxu0 0.0
    %559 = vmatpush1.msra.mxu0 %v147
    %560 = vmatprep.subr.mxu0 0.0
    %561 = vmatpush1.msra.mxu0 %v146
    %562 = vmatprep.subr.mxu0 0.0
    %563 = vmatpush1.msra.mxu0 %v145
    %564 = vmatprep.subr.mxu0 0.0
    %565 = vmatpush1.msra.mxu0 %v144
    %566 = vmatprep.subr.mxu0 0.0
    %567 = vmatpush2.msra.mxu0 0.0
    %568 = vmatprep.subr.mxu0 0.0
    %569 = vmatpush2.msra.mxu0 0.0
    %570 = vmatprep.subr.mxu0 0.0
    %571 = vmatpush2.msra.mxu0 0.0
    %572 = vmatprep.subr.mxu0 0.0
    %573 = vmatpush2.msra.mxu0 0.0
    %574 = vmatprep.subr.mxu0 0.0
    %575 = vmatpush2.msra.mxu0 0.0
    %576 = vmatprep.subr.mxu0 0.0
    %577 = vmatpush2.msra.mxu0 0.0
    %578 = vmatprep.subr.mxu0 0.0
    %579 = vmatpush2.msra.mxu0 0.0
    %580 = vmatprep.subr.mxu0 0.0
    %581 = vmatpush2.msra.mxu0 0.0
    %582 = vmatprep.subr.mxu0 0.0
    %583 = vmatpush2.msra.mxu0 0.0
    %584 = vmatprep.subr.mxu0 0.0
    %585 = vmatpush2.msra.mxu0 0.0
    %586 = vmatprep.subr.mxu0 0.0
    %587 = vmatpush2.msra.mxu0 0.0
    %588 = vmatprep.subr.mxu0 0.0
    %589 = vmatpush2.msra.mxu0 0.0
    %590 = vmatprep.subr.mxu0 0.0
    %591 = vmatpush2.msra.mxu0 0.0
    %592 = vmatprep.subr.mxu0 0.0
    %593 = vmatpush2.msra.mxu0 0.0
    %594 = vmatprep.subr.mxu0 0.0
    %595 = vmatpush2.msra.mxu0 0.0
    %596 = vmatprep.subr.mxu0 0.0
    %597 = vmatpush2.msra.mxu0 0.0
    %598 = vmatprep.mubr.f32.mxu0 0.0
    %599 = vmatmul.mubr.f32.gmra.mxu0 %v532
    %v600 = vpop.f32.mrf.mxu0
    %v601 = vadd.f32 %v530, %v600
    %v602 = vpop.f32.mrf.mxu0
    %603 = vdwg.mxu0
    %v604 = vtanh.pop %v601
    %605 = vst.msk [vmem:[#allocation2 + $0xa] sm:$0x3] %vm224, %v604
    %v606 = vld [vmem:[#allocation2 + $0xc] sm:$0x3]
    %v608 = vsel %vm141, %v604, 0
    %610 = vmatprep.subr.mxu0 0.0
    %611 = vmatpush1.msra.mxu0 0.0
    %612 = vmatprep.subr.mxu0 0.0
    %613 = vmatpush1.msra.mxu0 0.0
    %614 = vmatprep.subr.mxu0 0.0
    %615 = vmatpush1.msra.mxu0 0.0
    %616 = vmatprep.subr.mxu0 0.0
    %617 = vmatpush1.msra.mxu0 0.0
    %618 = vmatprep.subr.mxu0 0.0
    %619 = vmatpush1.msra.mxu0 0.0
    %620 = vmatprep.subr.mxu0 0.0
    %621 = vmatpush1.msra.mxu0 0.0
    %622 = vmatprep.subr.mxu0 0.0
    %623 = vmatpush1.msra.mxu0 0.0
    %624 = vmatprep.subr.mxu0 0.0
    %625 = vmatpush1.msra.mxu0 0.0
    %626 = vmatprep.subr.mxu0 0.0
    %627 = vmatpush1.msra.mxu0 0.0
    %628 = vmatprep.subr.mxu0 0.0
    %629 = vmatpush1.msra.mxu0 0.0
    %630 = vmatprep.subr.mxu0 0.0
    %631 = vmatpush1.msra.mxu0 0.0
    %632 = vmatprep.subr.mxu0 0.0
    %633 = vmatpush1.msra.mxu0 0.0
    %634 = vmatprep.subr.mxu0 0.0
    %635 = vmatpush1.msra.mxu0 %v147
    %636 = vmatprep.subr.mxu0 0.0
    %637 = vmatpush1.msra.mxu0 %v146
    %638 = vmatprep.subr.mxu0 0.0
    %639 = vmatpush1.msra.mxu0 %v145
    %640 = vmatprep.subr.mxu0 0.0
    %641 = vmatpush1.msra.mxu0 %v144
    %642 = vmatprep.subr.mxu0 0.0
    %643 = vmatpush2.msra.mxu0 0.0
    %644 = vmatprep.subr.mxu0 0.0
    %645 = vmatpush2.msra.mxu0 0.0
    %646 = vmatprep.subr.mxu0 0.0
    %647 = vmatpush2.msra.mxu0 0.0
    %648 = vmatprep.subr.mxu0 0.0
    %649 = vmatpush2.msra.mxu0 0.0
    %650 = vmatprep.subr.mxu0 0.0
    %651 = vmatpush2.msra.mxu0 0.0
    %652 = vmatprep.subr.mxu0 0.0
    %653 = vmatpush2.msra.mxu0 0.0
    %654 = vmatprep.subr.mxu0 0.0
    %655 = vmatpush2.msra.mxu0 0.0
    %656 = vmatprep.subr.mxu0 0.0
    %657 = vmatpush2.msra.mxu0 0.0
    %658 = vmatprep.subr.mxu0 0.0
    %659 = vmatpush2.msra.mxu0 0.0
    %660 = vmatprep.subr.mxu0 0.0
    %661 = vmatpush2.msra.mxu0 0.0
    %662 = vmatprep.subr.mxu0 0.0
    %663 = vmatpush2.msra.mxu0 0.0
    %664 = vmatprep.subr.mxu0 0.0
    %665 = vmatpush2.msra.mxu0 0.0
    %666 = vmatprep.subr.mxu0 0.0
    %667 = vmatpush2.msra.mxu0 0.0
    %668 = vmatprep.subr.mxu0 0.0
    %669 = vmatpush2.msra.mxu0 0.0
    %670 = vmatprep.subr.mxu0 0.0
    %671 = vmatpush2.msra.mxu0 0.0
    %672 = vmatprep.subr.mxu0 0.0
    %673 = vmatpush2.msra.mxu0 0.0
    %674 = vmatprep.mubr.f32.mxu0 0.0
    %675 = vmatmul.mubr.f32.gmra.mxu0 %v608
    %v676 = vpop.f32.mrf.mxu0
    %v677 = vadd.f32 %v606, %v676
    %v678 = vpop.f32.mrf.mxu0
    %679 = vdwg.mxu0
    %v680 = vtanh.pop %v677
    %681 = vst.msk [vmem:[#allocation2 + $0xc] sm:$0x3] %vm224, %v680
    %v682 = vld [vmem:[#allocation2 + $0xe] sm:$0x3]
    %v684 = vsel %vm141, %v680, 0
    %686 = vmatprep.subr.mxu0 0.0
    %687 = vmatpush1.msra.mxu0 0.0
    %688 = vmatprep.subr.mxu0 0.0
    %689 = vmatpush1.msra.mxu0 0.0
    %690 = vmatprep.subr.mxu0 0.0
    %691 = vmatpush1.msra.mxu0 0.0
    %692 = vmatprep.subr.mxu0 0.0
    %693 = vmatpush1.msra.mxu0 0.0
    %694 = vmatprep.subr.mxu0 0.0
    %695 = vmatpush1.msra.mxu0 0.0
    %696 = vmatprep.subr.mxu0 0.0
    %697 = vmatpush1.msra.mxu0 0.0
    %698 = vmatprep.subr.mxu0 0.0
    %699 = vmatpush1.msra.mxu0 0.0
    %700 = vmatprep.subr.mxu0 0.0
    %701 = vmatpush1.msra.mxu0 0.0
    %702 = vmatprep.subr.mxu0 0.0
    %703 = vmatpush1.msra.mxu0 0.0
    %704 = vmatprep.subr.mxu0 0.0
    %705 = vmatpush1.msra.mxu0 0.0
    %706 = vmatprep.subr.mxu0 0.0
    %707 = vmatpush1.msra.mxu0 0.0
    %708 = vmatprep.subr.mxu0 0.0
    %709 = vmatpush1.msra.mxu0 0.0
    %710 = vmatprep.subr.mxu0 0.0
    %711 = vmatpush1.msra.mxu0 %v147
    %712 = vmatprep.subr.mxu0 0.0
    %713 = vmatpush1.msra.mxu0 %v146
    %714 = vmatprep.subr.mxu0 0.0
    %715 = vmatpush1.msra.mxu0 %v145
    %716 = vmatprep.subr.mxu0 0.0
    %717 = vmatpush1.msra.mxu0 %v144
    %718 = vmatprep.subr.mxu0 0.0
    %719 = vmatpush2.msra.mxu0 0.0
    %720 = vmatprep.subr.mxu0 0.0
    %721 = vmatpush2.msra.mxu0 0.0
    %722 = vmatprep.subr.mxu0 0.0
    %723 = vmatpush2.msra.mxu0 0.0
    %724 = vmatprep.subr.mxu0 0.0
    %725 = vmatpush2.msra.mxu0 0.0
    %726 = vmatprep.subr.mxu0 0.0
    %727 = vmatpush2.msra.mxu0 0.0
    %728 = vmatprep.subr.mxu0 0.0
    %729 = vmatpush2.msra.mxu0 0.0
    %730 = vmatprep.subr.mxu0 0.0
    %731 = vmatpush2.msra.mxu0 0.0
    %732 = vmatprep.subr.mxu0 0.0
    %733 = vmatpush2.msra.mxu0 0.0
    %734 = vmatprep.subr.mxu0 0.0
    %735 = vmatpush2.msra.mxu0 0.0
    %736 = vmatprep.subr.mxu0 0.0
    %737 = vmatpush2.msra.mxu0 0.0
    %738 = vmatprep.subr.mxu0 0.0
    %739 = vmatpush2.msra.mxu0 0.0
    %740 = vmatprep.subr.mxu0 0.0
    %741 = vmatpush2.msra.mxu0 0.0
    %742 = vmatprep.subr.mxu0 0.0
    %743 = vmatpush2.msra.mxu0 0.0
    %744 = vmatprep.subr.mxu0 0.0
    %745 = vmatpush2.msra.mxu0 0.0
    %746 = vmatprep.subr.mxu0 0.0
    %747 = vmatpush2.msra.mxu0 0.0
    %748 = vmatprep.subr.mxu0 0.0
    %749 = vmatpush2.msra.mxu0 0.0
    %750 = vmatprep.mubr.f32.mxu0 0.0
    %751 = vmatmul.mubr.f32.gmra.mxu0 %v684
    %v752 = vpop.f32.mrf.mxu0
    %v753 = vadd.f32 %v682, %v752
    %v754 = vpop.f32.mrf.mxu0
    %755 = vdwg.mxu0
    %v756 = vtanh.pop %v753
    %757 = vst.msk [vmem:[#allocation2 + $0xe] sm:$0x3] %vm224, %v756
    %758 = vst.msk [vmem:[#allocation7] sm:$0x3] %vm224, %v756
    %v759 = vld [vmem:[#allocation2] sm:$0xff]
    %v760 = vld [vmem:[#allocation2 + $0x8] sm:$0xff]
    %v761 = vmax.f32 %v759, 0.0
    %v762 = vmax.f32 %v760, 0.0
    %v763 = vld [vmem:[%s5] sm:$0x1]
    %v765 = vlaneseq
    %v766 = vshrl.u32 %v765, 7
    %v767 = vsub.s32 0, %v766
    %v768 = vrot.slane %v763, %v767
    %v770 = vmul.f32 %v761, %v768
    %v771 = vmul.f32 %v762, %v768
    %v772 = vsel %vm141, %v770, 0.0
    %773 = vadd.xlane.f32.xlu0 %v772
    %v774 = vpop.xlane.xlu0 %773
    %v775 = vsel %vm141, %v771, 0.0
    %776 = vadd.xlane.f32.xlu0 %v775
    %v777 = vpop.xlane.xlu0 %776
    %v778 = vld [vmem:[#allocation3] sm:$0x1]
    %v780 = vlaneseq
    %v781 = vshrl.u32 %v780, 7
    %v782 = vsub.s32 0, %v781
    %v783 = vrot.slane %v778, %v782
    %v785 = vadd.f32 %v774, %v783
    %v786 = vadd.f32 %v777, %v783
    %vm787 = vcmask 7168
    %788 = vst.msk [vmem:[%s7] sm:$0xff] %vm787, %v785
    %789 = vst.msk [vmem:[%s7 + $0x8] sm:$0xff] %vm787, %v786
    // Predicated region
    $region34: #{tpu_custom_call.1} parent=1 // pred_check
      _
    $region35: #{tpu_custom_call.1} parent=1 // pred_check_branch
      %791 = sbr.rel (0) target = $region37
    $region36: #{tpu_custom_call.1} parent=1 // pred_region
      _
    $region37: #{tpu_custom_call.1} parent=1 // pred_fallthru
      _
    // Predicated region
    $region38: #{tpu_custom_call.1} parent=1 // pred_check
      _
    $region39: #{tpu_custom_call.1} parent=1 // pred_check_branch
      %793 = sbr.rel (0) target = $region41
    $region40: #{tpu_custom_call.1} parent=1 // pred_region
      %s795 = ssub.s32 32, 32
      %796 = vsyncadd [#allocation6], %s795
      %s798 = sshll.u32 [#allocation7], 4
      %s799 = int_to_ptr.vmem [resolvable:$true] %s798
      %801 = dma.vmem_to_hbm [thread:$0]  %s799, 32, %s8, [#allocation6]
    $region41: #{tpu_custom_call.1} parent=1 // pred_fallthru
      _
    // Predicated region
    $region42: #{tpu_custom_call.1} parent=1 // pred_check
      _
    $region43: #{tpu_custom_call.1} parent=1 // pred_check_branch
      %803 = sbr.rel (0) target = $region45
    $region44: #{tpu_custom_call.1} parent=1 // pred_region
      _
    $region45: #{tpu_custom_call.1} parent=1 // pred_fallthru
      _
    // Predicated region
    $region46: #{tpu_custom_call.1} parent=1 // pred_check
      _
    $region47: #{tpu_custom_call.1} parent=1 // pred_check_branch
      %805 = sbr.rel (0) target = $region49
    $region48: #{tpu_custom_call.1} parent=1 // pred_region
      %806 = dma.done [#allocation6], 32
    $region49: #{tpu_custom_call.1} parent=1 // pred_fallthru
      _
    %807 = vsyncpa [#allocation5], 1
    %808 = vsyncpa [#allocation6], 1

</llo_original>
